<compile_context>
chip_gen: v6e
topology: v6e:2x2x1
jax: 0.10.0
libtpu: 0.0.40
codegen_flags: <defaults>
</compile_context>

<pallas_src>
import functools

import jax
import jax.numpy as jnp
from jax.experimental import pallas as pl
from jax.experimental.pallas import tpu as pltpu

EPS = 1e-5
LANE = 128
SUBLANE = 8


def _round_up(n, m):
    return ((n + m - 1) // m) * m


def _pad_to(a, shape):
    pads = [(0, t - s) for s, t in zip(a.shape, shape)]
    return jnp.pad(a, pads)


# ---------------------------------------------------------------------------
# Kernel
# ---------------------------------------------------------------------------
def _mlp_bn_kernel(x_ref, w_ref, vec_ref, o_ref, *, dims, matmul_dtype):
    k0, n1, n2, n3 = dims            # static, lane-aligned (multiples of 128)
    x = x_ref[...]
    inv_b = 1.0 / x.shape[0]         # static batch size

    def bn_relu(h, g, be):
        # Fused one-pass stats (both reductions back-to-back on the XLU).
        s1 = jnp.sum(h, axis=0, keepdims=True)
        s2 = jnp.sum(h * h, axis=0, keepdims=True)
        mu = s1 * inv_b
        var = jnp.maximum(s2 * inv_b - mu * mu, 0.0)   # clamp cancellation
        scale = jax.lax.rsqrt(var + EPS) * g           # fold at (1, N) width
        return jnp.maximum((h - mu) * scale + be, 0.0)

    # Packed per-feature vectors (static, tile-aligned slices).
    g1, be1 = vec_ref[0:1, :n1], vec_ref[1:2, :n1]
    g2, be2 = vec_ref[2:3, :n2], vec_ref[3:4, :n2]
    b3 = vec_ref[4:5, :n3]

    # hidden1 + BN1 + relu (bias cancelled by mean subtraction)
    h = jnp.dot(x.astype(matmul_dtype),
                w_ref[0, :k0, :n1].astype(matmul_dtype),
                preferred_element_type=jnp.float32)
    h = bn_relu(h, g1, be1)

    # hidden2 + BN2 + relu (bias cancelled)
    h = jnp.dot(h.astype(matmul_dtype),
                w_ref[1, :n1, :n2].astype(matmul_dtype),
                preferred_element_type=jnp.float32)
    h = bn_relu(h, g2, be2)

    # predict (lane-dense 128-wide output; sliced back outside the kernel)
    o_ref[...] = (jnp.dot(h.astype(matmul_dtype),
                          w_ref[2, :n2, :n3].astype(matmul_dtype),
                          preferred_element_type=jnp.float32)
                  + b3).astype(o_ref.dtype)


# ---------------------------------------------------------------------------
# One-time parameter packing (hoisted out of the per-call path)
# ---------------------------------------------------------------------------
def prepare_params(params):
    """params = (w1, b1, g1, be1, w2, b2, g2, be2, w3, b3); w* are (in, out).

    b1/b2 are accepted (mirroring the PyTorch module) but NOT packed: training-
    mode BatchNorm cancels them exactly.
    Returns a dict with lane-padded, stacked weights + packed BN/bias vectors.
    """
    (w1, _b1, g1, be1, w2, _b2, g2, be2, w3, b3) = params
    k0 = _round_up(w1.shape[0], LANE)
    n1 = _round_up(w1.shape[1], LANE)
    n2 = _round_up(w2.shape[1], LANE)
    n3 = _round_up(w3.shape[1], LANE)
    kmax = max(k0, n1, n2)
    nmax = max(n1, n2, n3)

    # One (3, Kmax, Nmax) weight slab — zero padding is inert (sliced in-kernel
    # at static, 128-aligned bounds).
    w_stack = jnp.stack([
        _pad_to(w1.astype(jnp.float32), (kmax, nmax)),
        _pad_to(w2.astype(jnp.float32), (kmax, nmax)),
        _pad_to(w3.astype(jnp.float32), (kmax, nmax)),
    ])

    # One (8, Nmax) slab holding g1, be1, g2, be2, b3 as rows.
    rows = [g1, be1, g2, be2, b3]
    vec = jnp.concatenate(
        [_pad_to(r.reshape(1, -1).astype(jnp.float32), (1, nmax)) for r in rows],
        axis=0)
    vec = _pad_to(vec, (SUBLANE, nmax))

    return {
        "w_stack": w_stack,
        "vec": vec,
        "dims": (k0, n1, n2, n3),
        "n_in": int(w1.shape[0]),
        "n_out": int(w3.shape[1]),
    }


# ---------------------------------------------------------------------------
# Per-call wrapper
# ---------------------------------------------------------------------------
def net_forward(x, prepared, *, use_bf16_matmul=False):
    """x: (B, n_input) f32; prepared: output of prepare_params()."""
    B = x.shape[0]
    k0, n1, n2, n3 = prepared["dims"]
    assert B % SUBLANE == 0, "batch must be a multiple of 8 (sublane)"
    assert x.shape[1] == prepared["n_in"]

    xp = _pad_to(x.astype(jnp.float32), (B, k0))   # only per-call padding

    matmul_dtype = jnp.bfloat16 if use_bf16_matmul else jnp.float32
    kernel = functools.partial(_mlp_bn_kernel, dims=prepared["dims"],
                               matmul_dtype=matmul_dtype)

    # Tight VMEM ask: actual I/O footprint x2 safety + 1 MiB scratch headroom,
    # floored at 4 MiB (never the full 64 MiB of a v7x TC).
    kmax, nmax = prepared["w_stack"].shape[1], prepared["w_stack"].shape[2]
    io_bytes = 4 * (B * k0 + 3 * kmax * nmax + SUBLANE * nmax + B * n3)
    vmem_limit = max(4 * 1024 * 1024, 2 * io_bytes + (1 << 20))

    vmem = pl.BlockSpec(memory_space=pltpu.MemorySpace.VMEM)
    out_p = pl.pallas_call(
        kernel,
        out_shape=jax.ShapeDtypeStruct((B, n3), jnp.float32),
        in_specs=[vmem, vmem, vmem],
        out_specs=vmem,
        compiler_params=pltpu.CompilerParams(vmem_limit_bytes=vmem_limit),
    )(xp, prepared["w_stack"], prepared["vec"])

    return out_p[:, :prepared["n_out"]]


# ---------------------------------------------------------------------------
# Init + pure-JAX reference (mirrors the PyTorch forward exactly)
# ---------------------------------------------------------------------------
def init_params(key, n_input, n_hidden1, n_hidden2, n_output):
    """PyTorch-style init: Linear U[-1/sqrt(in), 1/sqrt(in)], BN gamma=1 beta=0.
    Weights stored as (in, out)."""
    ks = jax.random.split(key, 6)

    def lin(kw, kb, n_in, n_out):
        bound = 1.0 / jnp.sqrt(n_in)
        w = jax.random.uniform(kw, (n_in, n_out), jnp.float32, -bound, bound)
        b = jax.random.uniform(kb, (1, n_out), jnp.float32, -bound, bound)
        return w, b

    w1, b1 = lin(ks[0], ks[1], n_input, n_hidden1)
    w2, b2 = lin(ks[2], ks[3], n_hidden1, n_hidden2)
    w3, b3 = lin(ks[4], ks[5], n_hidden2, n_output)
    g1 = jnp.ones((1, n_hidden1), jnp.float32)
    be1 = jnp.zeros((1, n_hidden1), jnp.float32)
    g2 = jnp.ones((1, n_hidden2), jnp.float32)
    be2 = jnp.zeros((1, n_hidden2), jnp.float32)
    return (w1, b1, g1, be1, w2, b2, g2, be2, w3, b3)


def _reference(x, params):
    (w1, b1, g1, be1, w2, b2, g2, be2, w3, b3) = params

    def bn(h, g, be):
        mu = jnp.mean(h, axis=0, keepdims=True)
        var = jnp.mean((h - mu) ** 2, axis=0, keepdims=True)
        return (h - mu) / jnp.sqrt(var + EPS) * g + be

    h = jnp.maximum(bn(x @ w1 + b1, g1, be1), 0.0)
    h = jnp.maximum(bn(h @ w2 + b2, g2, be2), 0.0)
    return h @ w3 + b3


if __name__ == "__main__":
    B, n_input, n_hidden1, n_hidden2, n_output = 8, 16, 32, 32, 4

    key = jax.random.PRNGKey(0)
    kx, kp = jax.random.split(key)
    x = jax.random.normal(kx, (B, n_input), jnp.float32)
    params = init_params(kp, n_input, n_hidden1, n_hidden2, n_output)

    prepared = prepare_params(params)        # one-time pack/pad (hoisted)
    out = net_forward(x, prepared)           # f32 matmuls: matches PyTorch numerics
    out = jax.block_until_ready(out)

    ref = _reference(x, params)
    assert out.shape == (B, n_output)
    assert jnp.allclose(out, ref, atol=1e-4, rtol=1e-4)

    print("KERNEL_OK")
</pallas_src>

<mosaic_0001>
module attributes {stable_mosaic.version = 11 : i64} {
  func.func @_mlp_bn_kernel(%arg0: memref<8x128xf32, #tpu.memory_space<vmem>>, %arg1: memref<3x128x128xf32, #tpu.memory_space<vmem>>, %arg2: memref<8x128xf32, #tpu.memory_space<vmem>>, %arg3: memref<8x128xf32, #tpu.memory_space<vmem>>) attributes {dimension_semantics = [], scalar_prefetch = 0 : i64, scratch_operands = 0 : i64, tpu.core_type = #tpu.core_type<tc>} {
    %c0 = arith.constant 0 : index
    %c0_0 = arith.constant 0 : index
    %0 = vector.load %arg0[%c0, %c0_0] : memref<8x128xf32, #tpu.memory_space<vmem>>, vector<8x128xf32>
    %c0_1 = arith.constant 0 : index
    %c0_2 = arith.constant 0 : index
    %1 = vector.load %arg2[%c0_1, %c0_2] : memref<8x128xf32, #tpu.memory_space<vmem>>, vector<1x128xf32>
    %c1 = arith.constant 1 : index
    %c0_3 = arith.constant 0 : index
    %2 = vector.load %arg2[%c1, %c0_3] : memref<8x128xf32, #tpu.memory_space<vmem>>, vector<1x128xf32>
    %c2 = arith.constant 2 : index
    %c0_4 = arith.constant 0 : index
    %3 = vector.load %arg2[%c2, %c0_4] : memref<8x128xf32, #tpu.memory_space<vmem>>, vector<1x128xf32>
    %c3 = arith.constant 3 : index
    %c0_5 = arith.constant 0 : index
    %4 = vector.load %arg2[%c3, %c0_5] : memref<8x128xf32, #tpu.memory_space<vmem>>, vector<1x128xf32>
    %c4 = arith.constant 4 : index
    %c0_6 = arith.constant 0 : index
    %5 = vector.load %arg2[%c4, %c0_6] : memref<8x128xf32, #tpu.memory_space<vmem>>, vector<1x128xf32>
    %c0_7 = arith.constant 0 : index
    %c0_8 = arith.constant 0 : index
    %c0_9 = arith.constant 0 : index
    %6 = vector.load %arg1[%c0_7, %c0_8, %c0_9] : memref<3x128x128xf32, #tpu.memory_space<vmem>>, vector<1x128x128xf32>
    %7 = vector.shape_cast %6 : vector<1x128x128xf32> to vector<128x128xf32>
    %cst = arith.constant dense<0.000000e+00> : vector<8x128xf32>
    %8 = tpu.matmul %0, %7, %cst {dimension_numbers = #tpu.dot_dimension_numbers<[1], [0], [0], [1], [0, 0, 1, 1], [], []>} : vector<8x128xf32>, vector<128x128xf32>, vector<8x128xf32> -> vector<8x128xf32>
    %cst_10 = arith.constant dense<0.000000e+00> : vector<128xf32>
    %9 = vector.multi_reduction <add>, %8, %cst_10 [0] : vector<8x128xf32> to vector<128xf32>
    %10 = vector.shape_cast %9 : vector<128xf32> to vector<1x128xf32>
    %11 = arith.mulf %8, %8 : vector<8x128xf32>
    %cst_11 = arith.constant dense<0.000000e+00> : vector<128xf32>
    %12 = vector.multi_reduction <add>, %11, %cst_11 [0] : vector<8x128xf32> to vector<128xf32>
    %13 = vector.shape_cast %12 : vector<128xf32> to vector<1x128xf32>
    %cst_12 = arith.constant 1.250000e-01 : f32
    %14 = vector.broadcast %cst_12 : f32 to vector<1x128xf32>
    %15 = arith.mulf %10, %14 : vector<1x128xf32>
    %cst_13 = arith.constant 1.250000e-01 : f32
    %16 = vector.broadcast %cst_13 : f32 to vector<1x128xf32>
    %17 = arith.mulf %13, %16 : vector<1x128xf32>
    %18 = arith.mulf %15, %15 : vector<1x128xf32>
    %19 = arith.subf %17, %18 : vector<1x128xf32>
    %cst_14 = arith.constant 0.000000e+00 : f32
    %20 = vector.broadcast %cst_14 : f32 to vector<1x128xf32>
    %21 = arith.maximumf %19, %20 : vector<1x128xf32>
    %cst_15 = arith.constant 9.99999974E-6 : f32
    %22 = vector.broadcast %cst_15 : f32 to vector<1x128xf32>
    %23 = arith.addf %21, %22 : vector<1x128xf32>
    %24 = math.rsqrt %23 : vector<1x128xf32>
    %25 = arith.mulf %24, %1 : vector<1x128xf32>
    %26 = vector.broadcast %15 : vector<1x128xf32> to vector<8x128xf32>
    %27 = arith.subf %8, %26 : vector<8x128xf32>
    %28 = vector.broadcast %25 : vector<1x128xf32> to vector<8x128xf32>
    %29 = arith.mulf %27, %28 : vector<8x128xf32>
    %30 = vector.broadcast %2 : vector<1x128xf32> to vector<8x128xf32>
    %31 = arith.addf %29, %30 : vector<8x128xf32>
    %cst_16 = arith.constant 0.000000e+00 : f32
    %32 = vector.broadcast %cst_16 : f32 to vector<8x128xf32>
    %33 = arith.maximumf %31, %32 : vector<8x128xf32>
    %c1_17 = arith.constant 1 : index
    %c0_18 = arith.constant 0 : index
    %c0_19 = arith.constant 0 : index
    %34 = vector.load %arg1[%c1_17, %c0_18, %c0_19] : memref<3x128x128xf32, #tpu.memory_space<vmem>>, vector<1x128x128xf32>
    %35 = vector.shape_cast %34 : vector<1x128x128xf32> to vector<128x128xf32>
    %cst_20 = arith.constant dense<0.000000e+00> : vector<8x128xf32>
    %36 = tpu.matmul %33, %35, %cst_20 {dimension_numbers = #tpu.dot_dimension_numbers<[1], [0], [0], [1], [0, 0, 1, 1], [], []>} : vector<8x128xf32>, vector<128x128xf32>, vector<8x128xf32> -> vector<8x128xf32>
    %cst_21 = arith.constant dense<0.000000e+00> : vector<128xf32>
    %37 = vector.multi_reduction <add>, %36, %cst_21 [0] : vector<8x128xf32> to vector<128xf32>
    %38 = vector.shape_cast %37 : vector<128xf32> to vector<1x128xf32>
    %39 = arith.mulf %36, %36 : vector<8x128xf32>
    %cst_22 = arith.constant dense<0.000000e+00> : vector<128xf32>
    %40 = vector.multi_reduction <add>, %39, %cst_22 [0] : vector<8x128xf32> to vector<128xf32>
    %41 = vector.shape_cast %40 : vector<128xf32> to vector<1x128xf32>
    %cst_23 = arith.constant 1.250000e-01 : f32
    %42 = vector.broadcast %cst_23 : f32 to vector<1x128xf32>
    %43 = arith.mulf %38, %42 : vector<1x128xf32>
    %cst_24 = arith.constant 1.250000e-01 : f32
    %44 = vector.broadcast %cst_24 : f32 to vector<1x128xf32>
    %45 = arith.mulf %41, %44 : vector<1x128xf32>
    %46 = arith.mulf %43, %43 : vector<1x128xf32>
    %47 = arith.subf %45, %46 : vector<1x128xf32>
    %cst_25 = arith.constant 0.000000e+00 : f32
    %48 = vector.broadcast %cst_25 : f32 to vector<1x128xf32>
    %49 = arith.maximumf %47, %48 : vector<1x128xf32>
    %cst_26 = arith.constant 9.99999974E-6 : f32
    %50 = vector.broadcast %cst_26 : f32 to vector<1x128xf32>
    %51 = arith.addf %49, %50 : vector<1x128xf32>
    %52 = math.rsqrt %51 : vector<1x128xf32>
    %53 = arith.mulf %52, %3 : vector<1x128xf32>
    %54 = vector.broadcast %43 : vector<1x128xf32> to vector<8x128xf32>
    %55 = arith.subf %36, %54 : vector<8x128xf32>
    %56 = vector.broadcast %53 : vector<1x128xf32> to vector<8x128xf32>
    %57 = arith.mulf %55, %56 : vector<8x128xf32>
    %58 = vector.broadcast %4 : vector<1x128xf32> to vector<8x128xf32>
    %59 = arith.addf %57, %58 : vector<8x128xf32>
    %cst_27 = arith.constant 0.000000e+00 : f32
    %60 = vector.broadcast %cst_27 : f32 to vector<8x128xf32>
    %61 = arith.maximumf %59, %60 : vector<8x128xf32>
    %c2_28 = arith.constant 2 : index
    %c0_29 = arith.constant 0 : index
    %c0_30 = arith.constant 0 : index
    %62 = vector.load %arg1[%c2_28, %c0_29, %c0_30] : memref<3x128x128xf32, #tpu.memory_space<vmem>>, vector<1x128x128xf32>
    %63 = vector.shape_cast %62 : vector<1x128x128xf32> to vector<128x128xf32>
    %cst_31 = arith.constant dense<0.000000e+00> : vector<8x128xf32>
    %64 = tpu.matmul %61, %63, %cst_31 {dimension_numbers = #tpu.dot_dimension_numbers<[1], [0], [0], [1], [0, 0, 1, 1], [], []>} : vector<8x128xf32>, vector<128x128xf32>, vector<8x128xf32> -> vector<8x128xf32>
    %65 = vector.broadcast %5 : vector<1x128xf32> to vector<8x128xf32>
    %66 = arith.addf %64, %65 : vector<8x128xf32>
    %c0_32 = arith.constant 0 : index
    %c0_33 = arith.constant 0 : index
    %67 = vector.load %arg3[%c0_32, %c0_33] : memref<8x128xf32, #tpu.memory_space<vmem>>, vector<8x128xf32>
    tpu.vector_store %arg3[%c0_32, %c0_33], %66 {strides = array<i32>} : memref<8x128xf32, #tpu.memory_space<vmem>>, vector<8x128xf32>,
    return
  }
}

</mosaic_0001>

<llo_original>
// kernel: tpu_custom_call.1
$region0: #{tpu_custom_call.1}
  #allocation0 [shape = 'u32[]', space=smem, size = 0x4, offset = 0x4, fixed_abs, tag = 'smem constant byte address 0x4 - core index']
  #allocation1 [shape = 'u32[144,128]{1,0:T(1,128)}', space=vmem, size = 0x12000, scoped, tag = 'internal scratch']
  %s0 = inlined_call_operand.hbm [shape: f32[8,128], index: 0, kind: input, shape index: {}]
  %s1 = inlined_call_operand.hbm [shape: f32[3,128,128], index: 1, kind: input, shape index: {}]
  %s2 = inlined_call_operand.hbm [shape: f32[8,128], index: 2, kind: input, shape index: {}]
  %s3 = inlined_call_operand.hbm [shape: f32[8,128], index: 3, kind: output, shape index: {}]
  %s4 = sld [smem:[#allocation0]]
  $region34: #{tpu_custom_call.1} parent=0
    _
  %s6 = ssub.s32 1, %s4
  %s7 = scalar_select 0, %s6, %s4
  $region1: #{tpu_custom_call.1} parent=0
    #allocation2 [shape = 'u8[4096]{0}', space=vmem, size = 0x1000, scoped, tag = 'input window, operand 0, single buffered']
    #allocation3 [shape = 's32[1]{0}', space=sflag, size = 0x4, scoped, tag = 'scoped memory for tpu_custom_call.1']
    #allocation4 [shape = 's32[1]{0}', space=sflag, size = 0x4, scoped, tag = 'scoped memory for tpu_custom_call.1']
    #allocation5 [shape = 'u8[196608]{0}', space=vmem, size = 0x30000, scoped, tag = 'input window, operand 1, single buffered']
    #allocation6 [shape = 's32[1]{0}', space=sflag, size = 0x4, scoped, tag = 'scoped memory for tpu_custom_call.1']
    #allocation7 [shape = 'u8[4096]{0}', space=vmem, size = 0x1000, scoped, tag = 'input window, operand 2, single buffered']
    #allocation8 [shape = 'u8[4096]{0}', space=vmem, size = 0x1000, scoped, tag = 'output window, operand 0, single buffered']
    %8 = vsyncpa [#allocation3], 0
    %9 = vsyncpa [#allocation6], 0
    %10 = vsyncpa [#allocation4], 0
    // Predicated region
    $region2: #{tpu_custom_call.1} parent=1 // pred_check
      _
    $region3: #{tpu_custom_call.1} parent=1 // pred_check_branch
      %12 = sbr.rel (0) target = $region5
    $region4: #{tpu_custom_call.1} parent=1 // pred_region
      %s14 = ssub.s32 128, 128
      %15 = vsyncadd [#allocation3], %s14
      %s17 = sshll.u32 [#allocation2], 4
      %s18 = int_to_ptr.vmem [resolvable:$true] %s17
      %20 = dma.hbm_to_vmem [thread:$0]  %s0, 128, %s18, [#allocation3]
    $region5: #{tpu_custom_call.1} parent=1 // pred_fallthru
      _
    // Predicated region
    $region6: #{tpu_custom_call.1} parent=1 // pred_check
      _
    $region7: #{tpu_custom_call.1} parent=1 // pred_check_branch
      %22 = sbr.rel (0) target = $region9
    $region8: #{tpu_custom_call.1} parent=1 // pred_region
      %s24 = ssub.s32 6144, 6144
      %25 = vsyncadd [#allocation6], %s24
      %s26 = sshll.u32 [#allocation5], 4
      %s27 = int_to_ptr.vmem [resolvable:$true] %s26
      %32 = dma.hbm_to_vmem [thread:$0]  %s1, 6144, %s27, [#allocation6], 128, 128, 8
    $region9: #{tpu_custom_call.1} parent=1 // pred_fallthru
      _
    // Predicated region
    $region10: #{tpu_custom_call.1} parent=1 // pred_check
      _
    $region11: #{tpu_custom_call.1} parent=1 // pred_check_branch
      %34 = sbr.rel (0) target = $region13
    $region12: #{tpu_custom_call.1} parent=1 // pred_region
      %s36 = ssub.s32 128, 128
      %37 = vsyncadd [#allocation6], %s36
      %s39 = sshll.u32 [#allocation7], 4
      %s40 = int_to_ptr.vmem [resolvable:$true] %s39
      %42 = dma.hbm_to_vmem [thread:$0]  %s2, 128, %s40, [#allocation6]
    $region13: #{tpu_custom_call.1} parent=1 // pred_fallthru
      _
    // Predicated region
    $region14: #{tpu_custom_call.1} parent=1 // pred_check
      _
    $region15: #{tpu_custom_call.1} parent=1 // pred_check_branch
      %44 = sbr.rel (0) target = $region17
    $region16: #{tpu_custom_call.1} parent=1 // pred_region
      %45 = dma.done [#allocation3], 128
    $region17: #{tpu_custom_call.1} parent=1 // pred_fallthru
      _
    // Predicated region
    $region18: #{tpu_custom_call.1} parent=1 // pred_check
      _
    $region19: #{tpu_custom_call.1} parent=1 // pred_check_branch
      %47 = sbr.rel (0) target = $region21
    $region20: #{tpu_custom_call.1} parent=1 // pred_region
      %48 = dma.done [#allocation6], 6144
    $region21: #{tpu_custom_call.1} parent=1 // pred_fallthru
      _
    // Predicated region
    $region22: #{tpu_custom_call.1} parent=1 // pred_check
      _
    $region23: #{tpu_custom_call.1} parent=1 // pred_check_branch
      %50 = sbr.rel (0) target = $region25
    $region24: #{tpu_custom_call.1} parent=1 // pred_region
      %51 = dma.done [#allocation6], 128
    $region25: #{tpu_custom_call.1} parent=1 // pred_fallthru
      _
    %v52 = vld [vmem:[#allocation2] sm:$0xff]
    %v53 = vld [vmem:[#allocation7] sm:$0x1]
    %v54 = vld [vmem:[#allocation7 + $0x1] sm:$0x1]
    %v55 = vld [vmem:[#allocation7 + $0x2] sm:$0x1]
    %v56 = vld [vmem:[#allocation7 + $0x3] sm:$0x1]
    %v57 = vld [vmem:[#allocation7 + $0x4] sm:$0x1]
    %v58 = vld [vmem:[#allocation5] sm:$0xff]
    %v59 = vld [vmem:[#allocation5 + $0x8] sm:$0xff]
    %v60 = vld [vmem:[#allocation5 + $0x10] sm:$0xff]
    %v61 = vld [vmem:[#allocation5 + $0x18] sm:$0xff]
    %v62 = vld [vmem:[#allocation5 + $0x20] sm:$0xff]
    %v63 = vld [vmem:[#allocation5 + $0x28] sm:$0xff]
    %v64 = vld [vmem:[#allocation5 + $0x30] sm:$0xff]
    %v65 = vld [vmem:[#allocation5 + $0x38] sm:$0xff]
    %v66 = vld [vmem:[#allocation5 + $0x40] sm:$0xff]
    %v67 = vld [vmem:[#allocation5 + $0x48] sm:$0xff]
    %v68 = vld [vmem:[#allocation5 + $0x50] sm:$0xff]
    %v69 = vld [vmem:[#allocation5 + $0x58] sm:$0xff]
    %v70 = vld [vmem:[#allocation5 + $0x60] sm:$0xff]
    %v71 = vld [vmem:[#allocation5 + $0x68] sm:$0xff]
    %v72 = vld [vmem:[#allocation5 + $0x70] sm:$0xff]
    %v73 = vld [vmem:[#allocation5 + $0x78] sm:$0xff]
    %74 = vmatprep.subr.mxu0 0.0
    %75 = vmatpush1.msra.mxu0 %v73
    %76 = vmatprep.subr.mxu0 0.0
    %77 = vmatpush1.msra.mxu0 %v72
    %78 = vmatprep.subr.mxu0 0.0
    %79 = vmatpush1.msra.mxu0 %v71
    %80 = vmatprep.subr.mxu0 0.0
    %81 = vmatpush1.msra.mxu0 %v70
    %82 = vmatprep.subr.mxu0 0.0
    %83 = vmatpush1.msra.mxu0 %v69
    %84 = vmatprep.subr.mxu0 0.0
    %85 = vmatpush1.msra.mxu0 %v68
    %86 = vmatprep.subr.mxu0 0.0
    %87 = vmatpush1.msra.mxu0 %v67
    %88 = vmatprep.subr.mxu0 0.0
    %89 = vmatpush1.msra.mxu0 %v66
    %90 = vmatprep.subr.mxu0 0.0
    %91 = vmatpush1.msra.mxu0 %v65
    %92 = vmatprep.subr.mxu0 0.0
    %93 = vmatpush1.msra.mxu0 %v64
    %94 = vmatprep.subr.mxu0 0.0
    %95 = vmatpush1.msra.mxu0 %v63
    %96 = vmatprep.subr.mxu0 0.0
    %97 = vmatpush1.msra.mxu0 %v62
    %98 = vmatprep.subr.mxu0 0.0
    %99 = vmatpush1.msra.mxu0 %v61
    %100 = vmatprep.subr.mxu0 0.0
    %101 = vmatpush1.msra.mxu0 %v60
    %102 = vmatprep.subr.mxu0 0.0
    %103 = vmatpush1.msra.mxu0 %v59
    %104 = vmatprep.subr.mxu0 0.0
    %105 = vmatpush1.msra.mxu0 %v58
    %106 = vmatprep.subr.mxu0 0.0
    %107 = vmatpush2.msra.mxu0 0.0
    %108 = vmatprep.subr.mxu0 0.0
    %109 = vmatpush2.msra.mxu0 0.0
    %110 = vmatprep.subr.mxu0 0.0
    %111 = vmatpush2.msra.mxu0 0.0
    %112 = vmatprep.subr.mxu0 0.0
    %113 = vmatpush2.msra.mxu0 0.0
    %114 = vmatprep.subr.mxu0 0.0
    %115 = vmatpush2.msra.mxu0 0.0
    %116 = vmatprep.subr.mxu0 0.0
    %117 = vmatpush2.msra.mxu0 0.0
    %118 = vmatprep.subr.mxu0 0.0
    %119 = vmatpush2.msra.mxu0 0.0
    %120 = vmatprep.subr.mxu0 0.0
    %121 = vmatpush2.msra.mxu0 0.0
    %122 = vmatprep.subr.mxu0 0.0
    %123 = vmatpush2.msra.mxu0 0.0
    %124 = vmatprep.subr.mxu0 0.0
    %125 = vmatpush2.msra.mxu0 0.0
    %126 = vmatprep.subr.mxu0 0.0
    %127 = vmatpush2.msra.mxu0 0.0
    %128 = vmatprep.subr.mxu0 0.0
    %129 = vmatpush2.msra.mxu0 0.0
    %130 = vmatprep.subr.mxu0 0.0
    %131 = vmatpush2.msra.mxu0 0.0
    %132 = vmatprep.subr.mxu0 0.0
    %133 = vmatpush2.msra.mxu0 0.0
    %134 = vmatprep.subr.mxu0 0.0
    %135 = vmatpush2.msra.mxu0 0.0
    %136 = vmatprep.subr.mxu0 0.0
    %137 = vmatpush2.msra.mxu0 0.0
    %138 = vmatprep.mubr.f32.mxu0 0.0
    %139 = vmatmul.mubr.f32.gmra.mxu0 %v52
    %v140 = vpop.f32.mrf.mxu0
    %v141 = vadd.f32 0.0, %v140
    %v142 = vpop.f32.mrf.mxu0
    %143 = vdwg.mxu0
    %v144 = vrot.slane %v141, 4
    %v145 = vadd.f32 %v141, %v144
    %v146 = vrot.slane %v145, 2
    %v147 = vadd.f32 %v145, %v146
    %v148 = vrot.slane %v147, 1
    %v149 = vadd.f32 %v147, %v148
    %v150 = vmul.f32 %v141, %v141
    %v151 = vrot.slane %v150, 4
    %v152 = vadd.f32 %v150, %v151
    %v153 = vrot.slane %v152, 2
    %v154 = vadd.f32 %v152, %v153
    %v155 = vrot.slane %v154, 1
    %v156 = vadd.f32 %v154, %v155
    %v157 = vmul.f32 %v149, 0.125
    %v158 = vmul.f32 %v156, 0.125
    %v159 = vmul.f32 %v157, %v157
    %v160 = vsub.f32 %v158, %v159
    %v161 = vmax.f32 %v160, 0.0
    %v162 = vadd.f32 %v161, 1e-05
    %v163 = vrsqrt.pop %v162
    %v164 = vmul.f32 %v163, %v53
    %v165 = vsub.f32 %v141, %v157
    %v166 = vlaneseq
    %v167 = vshrl.u32 %v166, 7
    %v168 = vsub.s32 0, %v167
    %v169 = vrot.slane %v164, %v168
    %v170 = vmul.f32 %v165, %v169
    %v171 = vlaneseq
    %v172 = vshrl.u32 %v171, 7
    %v173 = vsub.s32 0, %v172
    %v174 = vrot.slane %v54, %v173
    %v175 = vadd.f32 %v170, %v174
    %v176 = vmax.f32 %v175, 0.0
    %s177 = scalar_lea.vmem [#allocation5], 128
    %v178 = vld [vmem:[%s177] sm:$0xff]
    %v179 = vld [vmem:[%s177 + $0x8] sm:$0xff]
    %v180 = vld [vmem:[%s177 + $0x10] sm:$0xff]
    %v181 = vld [vmem:[%s177 + $0x18] sm:$0xff]
    %v182 = vld [vmem:[%s177 + $0x20] sm:$0xff]
    %v183 = vld [vmem:[%s177 + $0x28] sm:$0xff]
    %v184 = vld [vmem:[%s177 + $0x30] sm:$0xff]
    %v185 = vld [vmem:[%s177 + $0x38] sm:$0xff]
    %v186 = vld [vmem:[%s177 + $0x40] sm:$0xff]
    %v187 = vld [vmem:[%s177 + $0x48] sm:$0xff]
    %v188 = vld [vmem:[%s177 + $0x50] sm:$0xff]
    %v189 = vld [vmem:[%s177 + $0x58] sm:$0xff]
    %v190 = vld [vmem:[%s177 + $0x60] sm:$0xff]
    %v191 = vld [vmem:[%s177 + $0x68] sm:$0xff]
    %v192 = vld [vmem:[%s177 + $0x70] sm:$0xff]
    %v193 = vld [vmem:[%s177 + $0x78] sm:$0xff]
    %194 = vmatprep.subr.mxu0 0.0
    %195 = vmatpush1.msra.mxu0 %v193
    %196 = vmatprep.subr.mxu0 0.0
    %197 = vmatpush1.msra.mxu0 %v192
    %198 = vmatprep.subr.mxu0 0.0
    %199 = vmatpush1.msra.mxu0 %v191
    %200 = vmatprep.subr.mxu0 0.0
    %201 = vmatpush1.msra.mxu0 %v190
    %202 = vmatprep.subr.mxu0 0.0
    %203 = vmatpush1.msra.mxu0 %v189
    %204 = vmatprep.subr.mxu0 0.0
    %205 = vmatpush1.msra.mxu0 %v188
    %206 = vmatprep.subr.mxu0 0.0
    %207 = vmatpush1.msra.mxu0 %v187
    %208 = vmatprep.subr.mxu0 0.0
    %209 = vmatpush1.msra.mxu0 %v186
    %210 = vmatprep.subr.mxu0 0.0
    %211 = vmatpush1.msra.mxu0 %v185
    %212 = vmatprep.subr.mxu0 0.0
    %213 = vmatpush1.msra.mxu0 %v184
    %214 = vmatprep.subr.mxu0 0.0
    %215 = vmatpush1.msra.mxu0 %v183
    %216 = vmatprep.subr.mxu0 0.0
    %217 = vmatpush1.msra.mxu0 %v182
    %218 = vmatprep.subr.mxu0 0.0
    %219 = vmatpush1.msra.mxu0 %v181
    %220 = vmatprep.subr.mxu0 0.0
    %221 = vmatpush1.msra.mxu0 %v180
    %222 = vmatprep.subr.mxu0 0.0
    %223 = vmatpush1.msra.mxu0 %v179
    %224 = vmatprep.subr.mxu0 0.0
    %225 = vmatpush1.msra.mxu0 %v178
    %226 = vmatprep.subr.mxu0 0.0
    %227 = vmatpush2.msra.mxu0 0.0
    %228 = vmatprep.subr.mxu0 0.0
    %229 = vmatpush2.msra.mxu0 0.0
    %230 = vmatprep.subr.mxu0 0.0
    %231 = vmatpush2.msra.mxu0 0.0
    %232 = vmatprep.subr.mxu0 0.0
    %233 = vmatpush2.msra.mxu0 0.0
    %234 = vmatprep.subr.mxu0 0.0
    %235 = vmatpush2.msra.mxu0 0.0
    %236 = vmatprep.subr.mxu0 0.0
    %237 = vmatpush2.msra.mxu0 0.0
    %238 = vmatprep.subr.mxu0 0.0
    %239 = vmatpush2.msra.mxu0 0.0
    %240 = vmatprep.subr.mxu0 0.0
    %241 = vmatpush2.msra.mxu0 0.0
    %242 = vmatprep.subr.mxu0 0.0
    %243 = vmatpush2.msra.mxu0 0.0
    %244 = vmatprep.subr.mxu0 0.0
    %245 = vmatpush2.msra.mxu0 0.0
    %246 = vmatprep.subr.mxu0 0.0
    %247 = vmatpush2.msra.mxu0 0.0
    %248 = vmatprep.subr.mxu0 0.0
    %249 = vmatpush2.msra.mxu0 0.0
    %250 = vmatprep.subr.mxu0 0.0
    %251 = vmatpush2.msra.mxu0 0.0
    %252 = vmatprep.subr.mxu0 0.0
    %253 = vmatpush2.msra.mxu0 0.0
    %254 = vmatprep.subr.mxu0 0.0
    %255 = vmatpush2.msra.mxu0 0.0
    %256 = vmatprep.subr.mxu0 0.0
    %257 = vmatpush2.msra.mxu0 0.0
    %258 = vmatprep.mubr.f32.mxu0 0.0
    %259 = vmatmul.mubr.f32.gmra.mxu0 %v176
    %v260 = vpop.f32.mrf.mxu0
    %v261 = vadd.f32 0.0, %v260
    %v262 = vpop.f32.mrf.mxu0
    %263 = vdwg.mxu0
    %v264 = vrot.slane %v261, 4
    %v265 = vadd.f32 %v261, %v264
    %v266 = vrot.slane %v265, 2
    %v267 = vadd.f32 %v265, %v266
    %v268 = vrot.slane %v267, 1
    %v269 = vadd.f32 %v267, %v268
    %v270 = vmul.f32 %v261, %v261
    %v271 = vrot.slane %v270, 4
    %v272 = vadd.f32 %v270, %v271
    %v273 = vrot.slane %v272, 2
    %v274 = vadd.f32 %v272, %v273
    %v275 = vrot.slane %v274, 1
    %v276 = vadd.f32 %v274, %v275
    %v277 = vmul.f32 %v269, 0.125
    %v278 = vmul.f32 %v276, 0.125
    %v279 = vmul.f32 %v277, %v277
    %v280 = vsub.f32 %v278, %v279
    %v281 = vmax.f32 %v280, 0.0
    %v282 = vadd.f32 %v281, 1e-05
    %v283 = vrsqrt.pop %v282
    %v284 = vmul.f32 %v283, %v55
    %v285 = vsub.f32 %v261, %v277
    %v286 = vlaneseq
    %v287 = vshrl.u32 %v286, 7
    %v288 = vsub.s32 0, %v287
    %v289 = vrot.slane %v284, %v288
    %v290 = vmul.f32 %v285, %v289
    %v291 = vlaneseq
    %v292 = vshrl.u32 %v291, 7
    %v293 = vsub.s32 0, %v292
    %v294 = vrot.slane %v56, %v293
    %v295 = vadd.f32 %v290, %v294
    %v296 = vmax.f32 %v295, 0.0
    %s297 = scalar_lea.vmem [#allocation5], 256
    %v298 = vld [vmem:[%s297] sm:$0xff]
    %v299 = vld [vmem:[%s297 + $0x8] sm:$0xff]
    %v300 = vld [vmem:[%s297 + $0x10] sm:$0xff]
    %v301 = vld [vmem:[%s297 + $0x18] sm:$0xff]
    %v302 = vld [vmem:[%s297 + $0x20] sm:$0xff]
    %v303 = vld [vmem:[%s297 + $0x28] sm:$0xff]
    %v304 = vld [vmem:[%s297 + $0x30] sm:$0xff]
    %v305 = vld [vmem:[%s297 + $0x38] sm:$0xff]
    %v306 = vld [vmem:[%s297 + $0x40] sm:$0xff]
    %v307 = vld [vmem:[%s297 + $0x48] sm:$0xff]
    %v308 = vld [vmem:[%s297 + $0x50] sm:$0xff]
    %v309 = vld [vmem:[%s297 + $0x58] sm:$0xff]
    %v310 = vld [vmem:[%s297 + $0x60] sm:$0xff]
    %v311 = vld [vmem:[%s297 + $0x68] sm:$0xff]
    %v312 = vld [vmem:[%s297 + $0x70] sm:$0xff]
    %v313 = vld [vmem:[%s297 + $0x78] sm:$0xff]
    %v314 = vlaneseq
    %v315 = vshrl.u32 %v314, 7
    %v316 = vsub.s32 0, %v315
    %v317 = vrot.slane %v57, %v316
    %318 = vmatprep.subr.mxu0 0.0
    %319 = vmatpush1.msra.mxu0 %v313
    %320 = vmatprep.subr.mxu0 0.0
    %321 = vmatpush1.msra.mxu0 %v312
    %322 = vmatprep.subr.mxu0 0.0
    %323 = vmatpush1.msra.mxu0 %v311
    %324 = vmatprep.subr.mxu0 0.0
    %325 = vmatpush1.msra.mxu0 %v310
    %326 = vmatprep.subr.mxu0 0.0
    %327 = vmatpush1.msra.mxu0 %v309
    %328 = vmatprep.subr.mxu0 0.0
    %329 = vmatpush1.msra.mxu0 %v308
    %330 = vmatprep.subr.mxu0 0.0
    %331 = vmatpush1.msra.mxu0 %v307
    %332 = vmatprep.subr.mxu0 0.0
    %333 = vmatpush1.msra.mxu0 %v306
    %334 = vmatprep.subr.mxu0 0.0
    %335 = vmatpush1.msra.mxu0 %v305
    %336 = vmatprep.subr.mxu0 0.0
    %337 = vmatpush1.msra.mxu0 %v304
    %338 = vmatprep.subr.mxu0 0.0
    %339 = vmatpush1.msra.mxu0 %v303
    %340 = vmatprep.subr.mxu0 0.0
    %341 = vmatpush1.msra.mxu0 %v302
    %342 = vmatprep.subr.mxu0 0.0
    %343 = vmatpush1.msra.mxu0 %v301
    %344 = vmatprep.subr.mxu0 0.0
    %345 = vmatpush1.msra.mxu0 %v300
    %346 = vmatprep.subr.mxu0 0.0
    %347 = vmatpush1.msra.mxu0 %v299
    %348 = vmatprep.subr.mxu0 0.0
    %349 = vmatpush1.msra.mxu0 %v298
    %350 = vmatprep.subr.mxu0 0.0
    %351 = vmatpush2.msra.mxu0 0.0
    %352 = vmatprep.subr.mxu0 0.0
    %353 = vmatpush2.msra.mxu0 0.0
    %354 = vmatprep.subr.mxu0 0.0
    %355 = vmatpush2.msra.mxu0 0.0
    %356 = vmatprep.subr.mxu0 0.0
    %357 = vmatpush2.msra.mxu0 0.0
    %358 = vmatprep.subr.mxu0 0.0
    %359 = vmatpush2.msra.mxu0 0.0
    %360 = vmatprep.subr.mxu0 0.0
    %361 = vmatpush2.msra.mxu0 0.0
    %362 = vmatprep.subr.mxu0 0.0
    %363 = vmatpush2.msra.mxu0 0.0
    %364 = vmatprep.subr.mxu0 0.0
    %365 = vmatpush2.msra.mxu0 0.0
    %366 = vmatprep.subr.mxu0 0.0
    %367 = vmatpush2.msra.mxu0 0.0
    %368 = vmatprep.subr.mxu0 0.0
    %369 = vmatpush2.msra.mxu0 0.0
    %370 = vmatprep.subr.mxu0 0.0
    %371 = vmatpush2.msra.mxu0 0.0
    %372 = vmatprep.subr.mxu0 0.0
    %373 = vmatpush2.msra.mxu0 0.0
    %374 = vmatprep.subr.mxu0 0.0
    %375 = vmatpush2.msra.mxu0 0.0
    %376 = vmatprep.subr.mxu0 0.0
    %377 = vmatpush2.msra.mxu0 0.0
    %378 = vmatprep.subr.mxu0 0.0
    %379 = vmatpush2.msra.mxu0 0.0
    %380 = vmatprep.subr.mxu0 0.0
    %381 = vmatpush2.msra.mxu0 0.0
    %382 = vmatprep.mubr.f32.mxu0 0.0
    %383 = vmatmul.mubr.f32.gmra.mxu0 %v296
    %v384 = vpop.f32.mrf.mxu0
    %v385 = vadd.f32 %v317, %v384
    %v386 = vpop.f32.mrf.mxu0
    %387 = vdwg.mxu0
    %388 = vst [vmem:[#allocation8] sm:$0xff] %v385
    // Predicated region
    $region26: #{tpu_custom_call.1} parent=1 // pred_check
      _
    $region27: #{tpu_custom_call.1} parent=1 // pred_check_branch
      %390 = sbr.rel (0) target = $region29
    $region28: #{tpu_custom_call.1} parent=1 // pred_region
      %s392 = ssub.s32 128, 128
      %393 = vsyncadd [#allocation4], %s392
      %s395 = sshll.u32 [#allocation8], 4
      %s396 = int_to_ptr.vmem [resolvable:$true] %s395
      %398 = dma.vmem_to_hbm [thread:$0]  %s396, 128, %s3, [#allocation4]
    $region29: #{tpu_custom_call.1} parent=1 // pred_fallthru
      _
    // Predicated region
    $region30: #{tpu_custom_call.1} parent=1 // pred_check
      _
    $region31: #{tpu_custom_call.1} parent=1 // pred_check_branch
      %400 = sbr.rel (0) target = $region33
    $region32: #{tpu_custom_call.1} parent=1 // pred_region
      %401 = dma.done [#allocation4], 128
    $region33: #{tpu_custom_call.1} parent=1 // pred_fallthru
      _
    %402 = vsyncpa [#allocation3], 1
    %403 = vsyncpa [#allocation6], 1
    %404 = vsyncpa [#allocation4], 1

</llo_original>
